<compile_context>
chip_gen: v7x
topology: tpu7x:2x2x1
jax: 0.10.0
libtpu: 0.0.40
codegen_flags: <defaults>
</compile_context>

<pallas_src>
import functools

import jax
import jax.numpy as jnp
from jax import lax
from jax.experimental import pallas as pl
from jax.experimental.pallas import tpu as pltpu

BN_EPS = 1e-5
LANE = 128
SUBLANE = 8
BF16_ROWS = 16           # bf16 native sublane tile height
TILE_N_MAX = 8192        # max rows of x per grid step
SPLIT_THRESHOLD = 2048   # force >=2 grid steps above this many rows (v7x 2 TCs)


def _round_up(x, m):
    return (x + m - 1) // m * m


def _cdiv(a, b):
    return (a + b - 1) // b


# ---------------------------------------------------------------------------
# Kernel
# ---------------------------------------------------------------------------
def _domain_classifier_kernel(
    x_ref,                     # (tile_n, input_dim)           bf16
    w1_ref, b1_ref,            # (input_dim, H1P) bf16, (1, H1P) f32
    w2_ref, b2_ref,            # (H1P, H2P) bf16,       (1, H2P) f32
    w3t_ref, b3t_ref,          # (OUTP, H2P) bf16,      (OUTP, 1) f32
    out_ref,                   # (OUTP, tile_n)                 f32
):
    # Layer 1: Linear (+ folded BN) + ReLU   (Dropout == identity in eval).
    h = jnp.dot(x_ref[...], w1_ref[...], preferred_element_type=jnp.float32)
    h = jnp.maximum(h + b1_ref[...], 0.0)

    # Layer 2: Linear (+ folded BN) + ReLU.
    h = jnp.dot(h.astype(w2_ref.dtype), w2_ref[...],
                preferred_element_type=jnp.float32)
    h = jnp.maximum(h + b2_ref[...], 0.0)

    # Layer 3: logits computed directly in transposed orientation:
    # (OUTP, H2P) x (tile_n, H2P) contracted on the last dims -> (OUTP, tile_n)
    # so the writeback is a lane-dense (8, tile_n) slab (no big transpose).
    logits_t = lax.dot_general(
        w3t_ref[...], h.astype(w3t_ref.dtype),
        dimension_numbers=(((1,), (1,)), ((), ())),
        preferred_element_type=jnp.float32)
    out_ref[...] = (logits_t + b3t_ref[...]).astype(out_ref.dtype)


# ---------------------------------------------------------------------------
# One-time host-side parameter preparation
# ---------------------------------------------------------------------------
def _fold_bn(w, b, g, beta, mean, var):
    """Fold eval-mode BatchNorm1d into the preceding Linear's weight/bias."""
    scale = g * lax.rsqrt(var + BN_EPS)          # (1, out)
    return w * scale, (b - mean) * scale + beta


def prepare_params(params):
    """Fold BN, zero-pad hidden dims to 128 lanes / num_domains to 8 sublanes,
    transpose layer 3, cast weights to bf16.  Call once; reuse per forward."""
    input_dim, hidden_dim = params["w1"].shape
    h2 = params["w2"].shape[1]
    num_domains = params["w3"].shape[1]

    w1, b1 = _fold_bn(params["w1"], params["b1"], params["g1"],
                      params["be1"], params["m1"], params["v1"])
    w2, b2 = _fold_bn(params["w2"], params["b2"], params["g2"],
                      params["be2"], params["m2"], params["v2"])
    w3, b3 = params["w3"], params["b3"]

    h1p = _round_up(hidden_dim, LANE)
    h2p = _round_up(h2, LANE)
    outp = _round_up(num_domains, SUBLANE)

    w1p = jnp.zeros((input_dim, h1p), jnp.float32).at[:, :hidden_dim].set(w1)
    b1p = jnp.zeros((1, h1p), jnp.float32).at[:, :hidden_dim].set(b1)
    w2p = jnp.zeros((h1p, h2p), jnp.float32).at[:hidden_dim, :h2].set(w2)
    b2p = jnp.zeros((1, h2p), jnp.float32).at[:, :h2].set(b2)
    w3t = jnp.zeros((outp, h2p), jnp.float32).at[:num_domains, :h2].set(w3.T)
    b3t = jnp.zeros((outp, 1), jnp.float32).at[:num_domains, 0].set(b3[0])

    return dict(
        w1=w1p.astype(jnp.bfloat16), b1=b1p,
        w2=w2p.astype(jnp.bfloat16), b2=b2p,
        w3t=w3t.astype(jnp.bfloat16), b3t=b3t,
    )


# ---------------------------------------------------------------------------
# Forward wrapper
# ---------------------------------------------------------------------------
def _vmem_limit_bytes():
    try:
        cap = pltpu.get_tpu_info().vmem_capacity_bytes
    except Exception:
        cap = 64 * 1024 * 1024          # conservative fallback (v7x physical)
    # Half of physical VMEM, capped at 48 MiB: 48 MiB on v5e/v6e, 32 MiB on v7x.
    return int(min(48 * 1024 * 1024, cap // 2))


@functools.partial(jax.jit, static_argnames=("num_domains",))
def domain_classifier_forward(x, prepared, *, num_domains):
    """Fused DomainClassifier forward (eval mode). Returns (n, num_domains)."""
    n, input_dim = x.shape
    outp = prepared["w3t"].shape[0]

    # --- batch tiling (multiples of 16 for bf16 sublane packing) ---
    n16 = _round_up(max(n, BF16_ROWS), BF16_ROWS)
    num_tiles = _cdiv(n16, TILE_N_MAX)
    if num_tiles == 1 and n16 >= SPLIT_THRESHOLD:
        num_tiles = 2                               # give both v7x TCs work
    if num_tiles > 1:
        # Gridded tiles must be lane-dense (multiple of 128) for the output.
        tile_n = _round_up(_cdiv(n16, num_tiles), LANE)
    else:
        tile_n = n16
    n_pad = tile_n * num_tiles

    x_bf = x.astype(jnp.bfloat16)
    if n_pad != n:
        x_bf = jnp.pad(x_bf, ((0, n_pad - n), (0, 0)))

    def resident(shape):
        # Full-array block, constant index -> stays VMEM-resident across grid.
        return pl.BlockSpec(shape, lambda i: (0, 0))

    # NOTE: if profiling ever shows exposed DMA on the streaming operands,
    # add pipeline_mode=pl.Buffered(3) to the x / out BlockSpecs.
    out_t = pl.pallas_call(
        _domain_classifier_kernel,
        out_shape=jax.ShapeDtypeStruct((outp, n_pad), jnp.float32),
        grid_spec=pl.GridSpec(
            grid=(num_tiles,),
            in_specs=[
                pl.BlockSpec((tile_n, input_dim), lambda i: (i, 0)),   # x tile
                resident(prepared["w1"].shape), resident(prepared["b1"].shape),
                resident(prepared["w2"].shape), resident(prepared["b2"].shape),
                resident(prepared["w3t"].shape), resident(prepared["b3t"].shape),
            ],
            out_specs=pl.BlockSpec((outp, tile_n), lambda i: (0, i)),
        ),
        compiler_params=pltpu.CompilerParams(
            dimension_semantics=("parallel",),
            vmem_limit_bytes=_vmem_limit_bytes(),
        ),
    )(x_bf, prepared["w1"], prepared["b1"], prepared["w2"], prepared["b2"],
      prepared["w3t"], prepared["b3t"])

    # Back to (n, num_domains) row-major logits.
    return out_t[:num_domains, :n].T


# ---------------------------------------------------------------------------
# Synthetic parameters + pure-JAX reference
# ---------------------------------------------------------------------------
def init_params(key, input_dim, hidden_dim, num_domains):
    """Deterministic synthetic parameter init (matching the module's shapes)."""
    h2 = hidden_dim // 2
    ks = jax.random.split(key, 5)

    def lin(k, fan_in, fan_out):
        kw, kb = jax.random.split(k)
        w = jax.random.normal(kw, (fan_in, fan_out), jnp.float32) * 0.05
        b = jax.random.normal(kb, (1, fan_out), jnp.float32) * 0.05
        return w, b

    def bn(k, dim):
        kg, kb, km, kv = jax.random.split(k, 4)
        g = 1.0 + 0.1 * jax.random.normal(kg, (1, dim), jnp.float32)
        be = 0.1 * jax.random.normal(kb, (1, dim), jnp.float32)
        m = 0.1 * jax.random.normal(km, (1, dim), jnp.float32)
        v = jax.random.uniform(kv, (1, dim), jnp.float32, 0.5, 1.5)
        return g, be, m, v

    w1, b1 = lin(ks[0], input_dim, hidden_dim)
    g1, be1, m1, v1 = bn(ks[1], hidden_dim)
    w2, b2 = lin(ks[2], hidden_dim, h2)
    g2, be2, m2, v2 = bn(ks[3], h2)
    w3, b3 = lin(ks[4], h2, num_domains)

    return dict(
        w1=w1, b1=b1, g1=g1, be1=be1, m1=m1, v1=v1,
        w2=w2, b2=b2, g2=g2, be2=be2, m2=m2, v2=v2,
        w3=w3, b3=b3,
    )


def reference_forward(x, p):
    """Pure-JAX reference (eval-mode PyTorch semantics, f32 throughout)."""
    h = x @ p["w1"] + p["b1"]
    h = (h - p["m1"]) * lax.rsqrt(p["v1"] + BN_EPS) * p["g1"] + p["be1"]
    h = jnp.maximum(h, 0.0)
    h = h @ p["w2"] + p["b2"]
    h = (h - p["m2"]) * lax.rsqrt(p["v2"] + BN_EPS) * p["g2"] + p["be2"]
    h = jnp.maximum(h, 0.0)
    return h @ p["w3"] + p["b3"]


if __name__ == "__main__":
    # Small shapes consistent with the module: batch=8, input_dim=32,
    # hidden_dim=64, num_domains=2.
    batch, input_dim, hidden_dim, num_domains = 8, 32, 64, 2

    key = jax.random.PRNGKey(0)
    kx, kp = jax.random.split(key)
    x = jax.random.normal(kx, (batch, input_dim), jnp.float32)
    params = init_params(kp, input_dim, hidden_dim, num_domains)

    prepared = prepare_params(params)                 # one-time weight prep
    out = domain_classifier_forward(x, prepared, num_domains=num_domains)
    out = jax.block_until_ready(out)

    ref = reference_forward(x, params)
    assert out.shape == (batch, num_domains)
    # bf16 weights/activations with f32 accumulation -> relaxed tolerance.
    assert jnp.allclose(out, ref, atol=2e-2, rtol=2e-2), "mismatch vs reference"

    print("KERNEL_OK")
</pallas_src>

<mosaic_0001>
module attributes {stable_mosaic.version = 11 : i64} {
  func.func @_domain_classifier_kernel(%arg0: i32, %arg1: memref<16x32xbf16, #tpu.memory_space<vmem>>, %arg2: memref<32x128xbf16, #tpu.memory_space<vmem>>, %arg3: memref<1x128xf32, #tpu.memory_space<vmem>>, %arg4: memref<128x128xbf16, #tpu.memory_space<vmem>>, %arg5: memref<1x128xf32, #tpu.memory_space<vmem>>, %arg6: memref<8x128xbf16, #tpu.memory_space<vmem>>, %arg7: memref<8x1xf32, #tpu.memory_space<vmem>>, %arg8: memref<8x16xf32, #tpu.memory_space<vmem>>) attributes {dimension_semantics = [#tpu.dimension_semantics<parallel>], iteration_bounds = array<i64: 1>, scalar_prefetch = 0 : i64, scratch_operands = 0 : i64, tpu.core_type = #tpu.core_type<tc>, window_params = [{transform_indices = @transform_0, window_bounds = array<i64: 16, 32>}, {pipeline_mode = #tpu.pipeline_mode<synchronous>, transform_indices = @transform_1, window_bounds = array<i64: 32, 128>}, {pipeline_mode = #tpu.pipeline_mode<synchronous>, transform_indices = @transform_2, window_bounds = array<i64: 1, 128>}, {pipeline_mode = #tpu.pipeline_mode<synchronous>, transform_indices = @transform_3, window_bounds = array<i64: 128, 128>}, {pipeline_mode = #tpu.pipeline_mode<synchronous>, transform_indices = @transform_4, window_bounds = array<i64: 1, 128>}, {pipeline_mode = #tpu.pipeline_mode<synchronous>, transform_indices = @transform_5, window_bounds = array<i64: 8, 128>}, {pipeline_mode = #tpu.pipeline_mode<synchronous>, transform_indices = @transform_6, window_bounds = array<i64: 8, 1>}, {transform_indices = @transform_7, window_bounds = array<i64: 8, 16>}]} {
    %c0 = arith.constant 0 : index
    %c0_0 = arith.constant 0 : index
    %0 = vector.load %arg1[%c0, %c0_0] : memref<16x32xbf16, #tpu.memory_space<vmem>>, vector<16x32xbf16>
    %c0_1 = arith.constant 0 : index
    %c0_2 = arith.constant 0 : index
    %1 = vector.load %arg2[%c0_1, %c0_2] : memref<32x128xbf16, #tpu.memory_space<vmem>>, vector<32x128xbf16>
    %cst = arith.constant dense<0.000000e+00> : vector<16x128xf32>
    %2 = tpu.matmul %0, %1, %cst {dimension_numbers = #tpu.dot_dimension_numbers<[1], [0], [0], [1], [0, 0, 1, 1], [], []>} : vector<16x32xbf16>, vector<32x128xbf16>, vector<16x128xf32> -> vector<16x128xf32>
    %c0_3 = arith.constant 0 : index
    %c0_4 = arith.constant 0 : index
    %3 = vector.load %arg3[%c0_3, %c0_4] : memref<1x128xf32, #tpu.memory_space<vmem>>, vector<1x128xf32>
    %4 = vector.broadcast %3 : vector<1x128xf32> to vector<16x128xf32>
    %5 = arith.addf %2, %4 : vector<16x128xf32>
    %cst_5 = arith.constant 0.000000e+00 : f32
    %6 = vector.broadcast %cst_5 : f32 to vector<16x128xf32>
    %7 = arith.maximumf %5, %6 : vector<16x128xf32>
    %8 = arith.truncf %7 : vector<16x128xf32> to vector<16x128xbf16>
    %c0_6 = arith.constant 0 : index
    %c0_7 = arith.constant 0 : index
    %9 = vector.load %arg4[%c0_6, %c0_7] : memref<128x128xbf16, #tpu.memory_space<vmem>>, vector<128x128xbf16>
    %cst_8 = arith.constant dense<0.000000e+00> : vector<16x128xf32>
    %10 = tpu.matmul %8, %9, %cst_8 {dimension_numbers = #tpu.dot_dimension_numbers<[1], [0], [0], [1], [0, 0, 1, 1], [], []>} : vector<16x128xbf16>, vector<128x128xbf16>, vector<16x128xf32> -> vector<16x128xf32>
    %c0_9 = arith.constant 0 : index
    %c0_10 = arith.constant 0 : index
    %11 = vector.load %arg5[%c0_9, %c0_10] : memref<1x128xf32, #tpu.memory_space<vmem>>, vector<1x128xf32>
    %12 = vector.broadcast %11 : vector<1x128xf32> to vector<16x128xf32>
    %13 = arith.addf %10, %12 : vector<16x128xf32>
    %cst_11 = arith.constant 0.000000e+00 : f32
    %14 = vector.broadcast %cst_11 : f32 to vector<16x128xf32>
    %15 = arith.maximumf %13, %14 : vector<16x128xf32>
    %c0_12 = arith.constant 0 : index
    %c0_13 = arith.constant 0 : index
    %16 = vector.load %arg6[%c0_12, %c0_13] : memref<8x128xbf16, #tpu.memory_space<vmem>>, vector<8x128xbf16>
    %17 = arith.truncf %15 : vector<16x128xf32> to vector<16x128xbf16>
    %cst_14 = arith.constant dense<0.000000e+00> : vector<8x16xf32>
    %18 = tpu.matmul %16, %17, %cst_14 {dimension_numbers = #tpu.dot_dimension_numbers<[1], [1], [0], [0], [0, 0, 1, 0], [], []>} : vector<8x128xbf16>, vector<16x128xbf16>, vector<8x16xf32> -> vector<8x16xf32>
    %c0_15 = arith.constant 0 : index
    %c0_16 = arith.constant 0 : index
    %19 = vector.load %arg7[%c0_15, %c0_16] : memref<8x1xf32, #tpu.memory_space<vmem>>, vector<8x1xf32>
    %20 = vector.broadcast %19 : vector<8x1xf32> to vector<8x16xf32>
    %21 = arith.addf %18, %20 : vector<8x16xf32>
    %c0_17 = arith.constant 0 : index
    %c0_18 = arith.constant 0 : index
    %22 = vector.load %arg8[%c0_17, %c0_18] : memref<8x16xf32, #tpu.memory_space<vmem>>, vector<8x16xf32>
    tpu.vector_store %arg8[%c0_17, %c0_18], %21 {strides = array<i32>} : memref<8x16xf32, #tpu.memory_space<vmem>>, vector<8x16xf32>,
    return
  }
  func.func @transform_0(%arg0: i32) -> (i32, i32) {
    %c0_i32 = arith.constant 0 : i32
    %c0_i32_0 = arith.constant 0 : i32
    return %arg0, %c0_i32 : i32, i32
  }
  func.func @transform_1(%arg0: i32) -> (i32, i32) {
    %c0_i32 = arith.constant 0 : i32
    %c0_i32_0 = arith.constant 0 : i32
    %c0_i32_1 = arith.constant 0 : i32
    return %c0_i32, %c0_i32_0 : i32, i32
  }
  func.func @transform_2(%arg0: i32) -> (i32, i32) {
    %c0_i32 = arith.constant 0 : i32
    %c0_i32_0 = arith.constant 0 : i32
    %c0_i32_1 = arith.constant 0 : i32
    return %c0_i32, %c0_i32_0 : i32, i32
  }
  func.func @transform_3(%arg0: i32) -> (i32, i32) {
    %c0_i32 = arith.constant 0 : i32
    %c0_i32_0 = arith.constant 0 : i32
    %c0_i32_1 = arith.constant 0 : i32
    return %c0_i32, %c0_i32_0 : i32, i32
  }
  func.func @transform_4(%arg0: i32) -> (i32, i32) {
    %c0_i32 = arith.constant 0 : i32
    %c0_i32_0 = arith.constant 0 : i32
    %c0_i32_1 = arith.constant 0 : i32
    return %c0_i32, %c0_i32_0 : i32, i32
  }
  func.func @transform_5(%arg0: i32) -> (i32, i32) {
    %c0_i32 = arith.constant 0 : i32
    %c0_i32_0 = arith.constant 0 : i32
    %c0_i32_1 = arith.constant 0 : i32
    return %c0_i32, %c0_i32_0 : i32, i32
  }
  func.func @transform_6(%arg0: i32) -> (i32, i32) {
    %c0_i32 = arith.constant 0 : i32
    %c0_i32_0 = arith.constant 0 : i32
    %c0_i32_1 = arith.constant 0 : i32
    return %c0_i32, %c0_i32_0 : i32, i32
  }
  func.func @transform_7(%arg0: i32) -> (i32, i32) {
    %c0_i32 = arith.constant 0 : i32
    %c0_i32_0 = arith.constant 0 : i32
    return %c0_i32, %arg0 : i32, i32
  }
}

</mosaic_0001>

<llo_original>
// kernel: domain_classifier_forward.1
$region0: #{domain_classifier_forward.1}
  #allocation0 [shape = 'u32[]', space=smem, size = 0x4, offset = 0x4, fixed_abs, tag = 'smem constant byte address 0x4 - core index']
  #allocation1 [shape = 'u32[144,128]{1,0:T(1,128)}', space=vmem, size = 0x12000, scoped, tag = 'internal scratch']
  %s0 = inlined_call_operand.vmem [shape: bf16[16,32], index: 0, kind: input, shape index: {}]
  %s1 = inlined_call_operand.vmem [shape: bf16[32,128], index: 1, kind: input, shape index: {}]
  %s2 = inlined_call_operand.vmem [shape: f32[1,128], index: 2, kind: input, shape index: {}]
  %s3 = inlined_call_operand.hbm [shape: bf16[128,128], index: 3, kind: input, shape index: {}]
  %s4 = inlined_call_operand.vmem [shape: f32[1,128], index: 4, kind: input, shape index: {}]
  %s5 = inlined_call_operand.vmem [shape: bf16[8,128], index: 5, kind: input, shape index: {}]
  %s6 = inlined_call_operand.vmem [shape: f32[8,1], index: 6, kind: input, shape index: {}]
  %s7 = inlined_call_operand.vmem [shape: f32[8,16], index: 7, kind: output, shape index: {}]
  %s8 = sld [smem:[#allocation0]]
  $region42: #{domain_classifier_forward.1} parent=0
    _
  %s10 = ssub.s32 1, %s8
  %s11 = scalar_select 0, %s10, %s8
  $region1: #{domain_classifier_forward.1} parent=0
    #allocation2 [shape = 'u8[32768]{0}', space=vmem, size = 0x8000, scoped, tag = 'input window, operand 3, single buffered']
    #allocation3 [shape = 's32[1]{0}', space=sflag, size = 0x4, scoped, tag = 'scoped memory for domain_classifier_forward.1']
    %12 = vsyncpa [#allocation3], 0
    // Predicated region
    $region2: #{domain_classifier_forward.1} parent=1 // pred_check
      _
    $region3: #{domain_classifier_forward.1} parent=1 // pred_check_branch
      %14 = sbr.rel (0) target = $region5
    $region4: #{domain_classifier_forward.1} parent=1 // pred_region
      _
    $region5: #{domain_classifier_forward.1} parent=1 // pred_fallthru
      _
    // Predicated region
    $region6: #{domain_classifier_forward.1} parent=1 // pred_check
      _
    $region7: #{domain_classifier_forward.1} parent=1 // pred_check_branch
      %16 = sbr.rel (0) target = $region9
    $region8: #{domain_classifier_forward.1} parent=1 // pred_region
      _
    $region9: #{domain_classifier_forward.1} parent=1 // pred_fallthru
      _
    // Predicated region
    $region10: #{domain_classifier_forward.1} parent=1 // pred_check
      _
    $region11: #{domain_classifier_forward.1} parent=1 // pred_check_branch
      %18 = sbr.rel (0) target = $region13
    $region12: #{domain_classifier_forward.1} parent=1 // pred_region
      _
    $region13: #{domain_classifier_forward.1} parent=1 // pred_fallthru
      _
    // Predicated region
    $region14: #{domain_classifier_forward.1} parent=1 // pred_check
      _
    $region15: #{domain_classifier_forward.1} parent=1 // pred_check_branch
      %20 = sbr.rel (0) target = $region17
    $region16: #{domain_classifier_forward.1} parent=1 // pred_region
      %s22 = ssub.s32 1024, 1024
      %23 = vsyncadd [#allocation3], %s22
      %s24 = sshll.u32 [#allocation2], 4
      %s25 = int_to_ptr.vmem [resolvable:$true] %s24
      %30 = dma.hbm_to_vmem [thread:$0]  %s3, 1024, %s25, [#allocation3], 64, 64, 4
    $region17: #{domain_classifier_forward.1} parent=1 // pred_fallthru
      _
    // Predicated region
    $region18: #{domain_classifier_forward.1} parent=1 // pred_check
      _
    $region19: #{domain_classifier_forward.1} parent=1 // pred_check_branch
      %32 = sbr.rel (0) target = $region21
    $region20: #{domain_classifier_forward.1} parent=1 // pred_region
      _
    $region21: #{domain_classifier_forward.1} parent=1 // pred_fallthru
      _
    // Predicated region
    $region22: #{domain_classifier_forward.1} parent=1 // pred_check
      _
    $region23: #{domain_classifier_forward.1} parent=1 // pred_check_branch
      %34 = sbr.rel (0) target = $region25
    $region24: #{domain_classifier_forward.1} parent=1 // pred_region
      _
    $region25: #{domain_classifier_forward.1} parent=1 // pred_fallthru
      _
    // Predicated region
    $region26: #{domain_classifier_forward.1} parent=1 // pred_check
      _
    $region27: #{domain_classifier_forward.1} parent=1 // pred_check_branch
      %36 = sbr.rel (0) target = $region29
    $region28: #{domain_classifier_forward.1} parent=1 // pred_region
      _
    $region29: #{domain_classifier_forward.1} parent=1 // pred_fallthru
      _
    // Predicated region
    $region30: #{domain_classifier_forward.1} parent=1 // pred_check
      _
    $region31: #{domain_classifier_forward.1} parent=1 // pred_check_branch
      %38 = sbr.rel (0) target = $region33
    $region32: #{domain_classifier_forward.1} parent=1 // pred_region
      %39 = dma.done [#allocation3], 1024
    $region33: #{domain_classifier_forward.1} parent=1 // pred_fallthru
      _
    %v41 = vld [vmem:[%s0] sm:$0xf]
    %v42 = vld [vmem:[%s0 + $0x4] sm:$0xf]
    %v43 = vld [vmem:[%s1] sm:$0xf]
    %v44 = vld [vmem:[%s1 + $0x4] sm:$0xf]
    %v45 = vld [vmem:[%s1 + $0x8] sm:$0xf]
    %v46 = vld [vmem:[%s1 + $0xc] sm:$0xf]
    %v47 = vld [vmem:[%s2] sm:$0x1]
    %v49 = vlaneseq
    %v50 = vshrl.u32 %v49, 7
    %v51 = vsub.s32 0, %v50
    %v52 = vrot.slane %v47, %v51
    %v56 = vunpack.c.l.b16 %v41
    %v57 = vunpack.c.l.b16 %v42
    %v58 = vpack.c.b16 %v57, %v56
    %v63 = vunpack.c.l.b16 %v43
    %v64 = vunpack.c.l.b16 %v44
    %v65 = vunpack.c.l.b16 %v45
    %v66 = vunpack.c.l.b16 %v46
    %v67 = vpack.c.b16 %v64, %v63
    %v68 = vpack.c.b16 %v66, %v65
    %vm71 = vcmask 261120
    %v73 = vsel %vm71, %v58, 0
    %75 = vmatprep.subr.bf16.mxu0 0
    %76 = vmatpush1.bf16.msra.mxu0 %v67
    %77 = vmatprep.subr.bf16.mxu0 0
    %78 = vmatpush1.bf16.msra.mxu0 %v68
    %79 = vmatprep.subr.bf16.mxu0 0
    %80 = vmatpush1.bf16.msra.mxu0 0
    %81 = vmatprep.subr.bf16.mxu0 0
    %82 = vmatpush1.bf16.msra.mxu0 0
    %83 = vmatprep.subr.bf16.mxu0 0
    %84 = vmatpush1.bf16.msra.mxu0 0
    %85 = vmatprep.subr.bf16.mxu0 0
    %86 = vmatpush1.bf16.msra.mxu0 0
    %87 = vmatprep.subr.bf16.mxu0 0
    %88 = vmatpush1.bf16.msra.mxu0 0
    %89 = vmatprep.subr.bf16.mxu0 0
    %90 = vmatpush1.bf16.msra.mxu0 0
    %91 = vmatprep.subr.bf16.mxu0 0
    %92 = vmatpush1.bf16.msra.mxu0 0
    %93 = vmatprep.subr.bf16.mxu0 0
    %94 = vmatpush1.bf16.msra.mxu0 0
    %95 = vmatprep.subr.bf16.mxu0 0
    %96 = vmatpush1.bf16.msra.mxu0 0
    %97 = vmatprep.subr.bf16.mxu0 0
    %98 = vmatpush1.bf16.msra.mxu0 0
    %99 = vmatprep.subr.bf16.mxu0 0
    %100 = vmatpush1.bf16.msra.mxu0 0
    %101 = vmatprep.subr.bf16.mxu0 0
    %102 = vmatpush1.bf16.msra.mxu0 0
    %103 = vmatprep.subr.bf16.mxu0 0
    %104 = vmatpush1.bf16.msra.mxu0 0
    %105 = vmatprep.subr.bf16.mxu0 0
    %106 = vmatpush1.bf16.msra.mxu0 0
    %107 = vmatprep.mubr.bf16.mxu0 0
    %108 = vmatmul.mubr.bf16.gmra.mrb[0].mxu0 %v73
    %v109 = vpop.f32.mrb[0].mxu0
    %v110 = vadd.f32 %v52, %v109
    %v111 = vpop.f32.mrb[0].mxu0
    %v112 = vpop.f32.mrb[0].mxu0
    %v113 = vadd.f32 %v52, %v112
    %v114 = vpop.f32.mrb[0].mxu0
    %115 = vdwg.mxu0
    %v116 = vmax.f32 %v110, 0.0
    %v117 = vmax.f32 %v113, 0.0
    %v118 = vpack.c.bf16 %v117, %v116
    %v119 = vld [vmem:[#allocation2] sm:$0xf]
    %v120 = vld [vmem:[#allocation2 + $0x4] sm:$0xf]
    %v121 = vld [vmem:[#allocation2 + $0x8] sm:$0xf]
    %v122 = vld [vmem:[#allocation2 + $0xc] sm:$0xf]
    %v123 = vld [vmem:[#allocation2 + $0x10] sm:$0xf]
    %v124 = vld [vmem:[#allocation2 + $0x14] sm:$0xf]
    %v125 = vld [vmem:[#allocation2 + $0x18] sm:$0xf]
    %v126 = vld [vmem:[#allocation2 + $0x1c] sm:$0xf]
    %v127 = vld [vmem:[#allocation2 + $0x20] sm:$0xf]
    %v128 = vld [vmem:[#allocation2 + $0x24] sm:$0xf]
    %v129 = vld [vmem:[#allocation2 + $0x28] sm:$0xf]
    %v130 = vld [vmem:[#allocation2 + $0x2c] sm:$0xf]
    %v131 = vld [vmem:[#allocation2 + $0x30] sm:$0xf]
    %v132 = vld [vmem:[#allocation2 + $0x34] sm:$0xf]
    %v133 = vld [vmem:[#allocation2 + $0x38] sm:$0xf]
    %v134 = vld [vmem:[#allocation2 + $0x3c] sm:$0xf]
    %v135 = vld [vmem:[%s4] sm:$0x1]
    %v137 = vlaneseq
    %v138 = vshrl.u32 %v137, 7
    %v139 = vsub.s32 0, %v138
    %v140 = vrot.slane %v135, %v139
    %v158 = vunpack.c.l.b16 %v119
    %v159 = vunpack.c.l.b16 %v120
    %v160 = vunpack.c.l.b16 %v121
    %v161 = vunpack.c.l.b16 %v122
    %v162 = vunpack.c.l.b16 %v123
    %v163 = vunpack.c.l.b16 %v124
    %v164 = vunpack.c.l.b16 %v125
    %v165 = vunpack.c.l.b16 %v126
    %v166 = vunpack.c.l.b16 %v127
    %v167 = vunpack.c.l.b16 %v128
    %v168 = vunpack.c.l.b16 %v129
    %v169 = vunpack.c.l.b16 %v130
    %v170 = vunpack.c.l.b16 %v131
    %v171 = vunpack.c.l.b16 %v132
    %v172 = vunpack.c.l.b16 %v133
    %v173 = vunpack.c.l.b16 %v134
    %v174 = vpack.c.b16 %v159, %v158
    %v175 = vpack.c.b16 %v161, %v160
    %v176 = vpack.c.b16 %v163, %v162
    %v177 = vpack.c.b16 %v165, %v164
    %v178 = vpack.c.b16 %v167, %v166
    %v179 = vpack.c.b16 %v169, %v168
    %v180 = vpack.c.b16 %v171, %v170
    %v181 = vpack.c.b16 %v173, %v172
    %190 = vmatprep.subr.bf16.mxu0 0
    %191 = vmatpush1.bf16.msra.mxu0 %v174
    %192 = vmatprep.subr.bf16.mxu0 0
    %193 = vmatpush1.bf16.msra.mxu0 %v175
    %194 = vmatprep.subr.bf16.mxu0 0
    %195 = vmatpush1.bf16.msra.mxu0 %v176
    %196 = vmatprep.subr.bf16.mxu0 0
    %197 = vmatpush1.bf16.msra.mxu0 %v177
    %198 = vmatprep.subr.bf16.mxu0 0
    %199 = vmatpush1.bf16.msra.mxu0 %v178
    %200 = vmatprep.subr.bf16.mxu0 0
    %201 = vmatpush1.bf16.msra.mxu0 %v179
    %202 = vmatprep.subr.bf16.mxu0 0
    %203 = vmatpush1.bf16.msra.mxu0 %v180
    %204 = vmatprep.subr.bf16.mxu0 0
    %205 = vmatpush1.bf16.msra.mxu0 %v181
    %206 = vmatprep.subr.bf16.mxu0 0
    %207 = vmatpush1.bf16.msra.mxu0 0
    %208 = vmatprep.subr.bf16.mxu0 0
    %209 = vmatpush1.bf16.msra.mxu0 0
    %210 = vmatprep.subr.bf16.mxu0 0
    %211 = vmatpush1.bf16.msra.mxu0 0
    %212 = vmatprep.subr.bf16.mxu0 0
    %213 = vmatpush1.bf16.msra.mxu0 0
    %214 = vmatprep.subr.bf16.mxu0 0
    %215 = vmatpush1.bf16.msra.mxu0 0
    %216 = vmatprep.subr.bf16.mxu0 0
    %217 = vmatpush1.bf16.msra.mxu0 0
    %218 = vmatprep.subr.bf16.mxu0 0
    %219 = vmatpush1.bf16.msra.mxu0 0
    %220 = vmatprep.subr.bf16.mxu0 0
    %221 = vmatpush1.bf16.msra.mxu0 0
    %222 = vmatprep.mubr.bf16.mxu0 0
    %223 = vmatmul.mubr.bf16.gmra.mrb[0].mxu0 %v118
    %v224 = vpop.f32.mrb[0].mxu0
    %v225 = vadd.f32 %v140, %v224
    %v226 = vpop.f32.mrb[0].mxu0
    %v227 = vpop.f32.mrb[0].mxu0
    %v228 = vadd.f32 %v140, %v227
    %v229 = vpop.f32.mrb[0].mxu0
    %230 = vdwg.mxu0
    %v231 = vmax.f32 %v225, 0.0
    %v232 = vmax.f32 %v228, 0.0
    %v233 = vld [vmem:[%s5] sm:$0xf]
    %v234 = vpack.c.bf16 %v232, %v231
    %v235 = vld [vmem:[%s6] sm:$0xff]
    %237 = vset.pattern.permute.xlu0 0
    %238 = vperm.xlu0 %237, %v235
    %v239 = vpop.permute.xlu0 %238
    %241 = vmatprep.subr.bf16.mxu0 0
    %242 = vmatpush1.bf16.xpose.msra.mxu0 %v234
    %243 = vmatprep.subr.bf16.mxu0 0
    %244 = vmatpush1.bf16.xpose.msra.mxu0 0
    %245 = vmatprep.subr.bf16.mxu0 0
    %246 = vmatpush1.bf16.xpose.msra.mxu0 0
    %247 = vmatprep.subr.bf16.mxu0 0
    %248 = vmatpush1.bf16.xpose.msra.mxu0 0
    %249 = vmatprep.subr.bf16.mxu0 0
    %250 = vmatpush1.bf16.xpose.msra.mxu0 0
    %251 = vmatprep.subr.bf16.mxu0 0
    %252 = vmatpush1.bf16.xpose.msra.mxu0 0
    %253 = vmatprep.subr.bf16.mxu0 0
    %254 = vmatpush1.bf16.xpose.msra.mxu0 0
    %255 = vmatprep.subr.bf16.mxu0 0
    %256 = vmatpush1.bf16.xpose.msra.mxu0 0
    %257 = vmatprep.subr.bf16.mxu0 0
    %258 = vmatpush1.bf16.xpose.msra.mxu0 0
    %259 = vmatprep.subr.bf16.mxu0 0
    %260 = vmatpush1.bf16.xpose.msra.mxu0 0
    %261 = vmatprep.subr.bf16.mxu0 0
    %262 = vmatpush1.bf16.xpose.msra.mxu0 0
    %263 = vmatprep.subr.bf16.mxu0 0
    %264 = vmatpush1.bf16.xpose.msra.mxu0 0
    %265 = vmatprep.subr.bf16.mxu0 0
    %266 = vmatpush1.bf16.xpose.msra.mxu0 0
    %267 = vmatprep.subr.bf16.mxu0 0
    %268 = vmatpush1.bf16.xpose.msra.mxu0 0
    %269 = vmatprep.subr.bf16.mxu0 0
    %270 = vmatpush1.bf16.xpose.msra.mxu0 0
    %271 = vmatprep.subr.bf16.mxu0 0
    %272 = vmatpush1.bf16.xpose.msra.mxu0 0
    %273 = vmatprep.mubr.bf16.mxu0 0
    %274 = vmatmul.mubr.bf16.gmra.mrb[0].mxu0 %v233
    %v275 = vpop.f32.mrb[0].mxu0
    %v276 = vadd.f32 %v239, %v275
    %v277 = vpop.f32.mrb[0].mxu0
    %v278 = vpop.f32.mrb[0].mxu0
    %v279 = vpop.f32.mrb[0].mxu0
    %280 = vdwg.mxu0
    %vm281 = vcmask 130048
    %282 = vst.msk [vmem:[%s7] sm:$0xff] %vm281, %v276
    // Predicated region
    $region34: #{domain_classifier_forward.1} parent=1 // pred_check
      _
    $region35: #{domain_classifier_forward.1} parent=1 // pred_check_branch
      %284 = sbr.rel (0) target = $region37
    $region36: #{domain_classifier_forward.1} parent=1 // pred_region
      _
    $region37: #{domain_classifier_forward.1} parent=1 // pred_fallthru
      _
    // Predicated region
    $region38: #{domain_classifier_forward.1} parent=1 // pred_check
      _
    $region39: #{domain_classifier_forward.1} parent=1 // pred_check_branch
      %286 = sbr.rel (0) target = $region41
    $region40: #{domain_classifier_forward.1} parent=1 // pred_region
      _
    $region41: #{domain_classifier_forward.1} parent=1 // pred_fallthru
      _
    %287 = vsyncpa [#allocation3], 1

</llo_original>
